<compile_context>
chip_gen: v5e
topology: v5e:2x2
jax: 0.10.0
libtpu: 0.0.40
codegen_flags: <defaults>
</compile_context>

<pallas_src>
import jax
import jax.numpy as jnp
from jax.experimental import pallas as pl
from jax.experimental.pallas import tpu as pltpu


def _make_attention_kernel(S: int, H: int, A: int):
    inv_scale = 1.0 / (float(A) ** 0.5)

    def kernel(q_ref, k_ref, v_ref, wq_ref, wk_ref, wv_ref, out_ref, attn_ref):
        # All refs are 2-D tiles for ONE batch element (leading batch dim squeezed):
        #   q_ref/k_ref/v_ref: (S, H)    wq_ref/wk_ref/wv_ref: (H, A)
        #   out_ref: (S, A)              attn_ref: (S, S)

        # Three single-tile MXU projections (no fused weight, no lane slicing).
        q = jnp.dot(q_ref[...], wq_ref[...], preferred_element_type=jnp.float32)  # (S, A)
        k = jnp.dot(k_ref[...], wk_ref[...], preferred_element_type=jnp.float32)  # (S, A)
        v = jnp.dot(v_ref[...], wv_ref[...], preferred_element_type=jnp.float32)  # (S, A)

        # scores = q @ k^T with the transpose folded into the contraction
        # (no XLU vxpose), then the reference's post-matmul 1/sqrt(A) scale
        # (a single-vreg VPU multiply at these sizes).
        scores = jax.lax.dot_general(
            q, k,
            dimension_numbers=(((1,), (1,)), ((), ())),
            preferred_element_type=jnp.float32,
        ) * inv_scale                                                              # (S, S)

        # TODO(synk): optional boolean mask (masked_fill with -inf) not wired in;
        # the reference forward is exercised with mask=None.

        # Numerically stable softmax; divide via reciprocal + multiply.
        s_max = jnp.max(scores, axis=-1, keepdims=True)
        p = jnp.exp(scores - s_max)
        denom = jnp.sum(p, axis=-1, keepdims=True)
        p = p * pl.reciprocal(denom, approx=False)

        attn_ref[...] = p.astype(attn_ref.dtype)

        # weighted_v = attn @ v  (dropout is identity in eval mode)
        out_ref[...] = jnp.dot(p, v, preferred_element_type=jnp.float32).astype(out_ref.dtype)

    return kernel


def self_attention(query, key, value, wq, wk, wv):
    """query/key/value: [B, S, H]; wq/wk/wv: [H, A]. Returns (weighted_v, attention_score)."""
    B, S, H = query.shape
    A = wq.shape[1]

    kernel = _make_attention_kernel(S, H, A)

    act_spec = pl.BlockSpec((None, S, H), lambda b: (b, 0, 0))   # per-batch 2-D tile
    w_spec = pl.BlockSpec((H, A), lambda b: (0, 0))              # weights resident

    weighted_v, attention_score = pl.pallas_call(
        kernel,
        out_shape=(
            jax.ShapeDtypeStruct((B, S, A), query.dtype),
            jax.ShapeDtypeStruct((B, S, S), jnp.float32),
        ),
        grid=(B,),  # one grid step per batch element -> both TCs used on v7x
        in_specs=[act_spec, act_spec, act_spec, w_spec, w_spec, w_spec],
        out_specs=(
            pl.BlockSpec((None, S, A), lambda b: (b, 0, 0)),     # weighted_v
            pl.BlockSpec((None, S, S), lambda b: (b, 0, 0)),     # attention_score
        ),
        compiler_params=pltpu.CompilerParams(
            dimension_semantics=("parallel",),
        ),
    )(query, key, value, wq, wk, wv)

    return weighted_v, attention_score


def _reference(query, key, value, wq, wk, wv):
    q = query @ wq
    k = key @ wk
    v = value @ wv
    scale = jnp.sqrt(jnp.float32(wq.shape[1]))
    s = jnp.einsum("bqd,bkd->bqk", q, k) / scale
    p = jax.nn.softmax(s, axis=-1)
    return jnp.einsum("bqk,bkd->bqd", p, v), p


if __name__ == "__main__":
    # Small shapes implied by the module: hidden_dim=32, n_head=4 -> attention_dim=8
    B, S, H, N_HEAD = 2, 8, 32, 4
    A = H // N_HEAD

    key0 = jax.random.PRNGKey(0)
    kq, kk, kv, kwq, kwk, kwv = jax.random.split(key0, 6)

    query = jax.random.normal(kq, (B, S, H), dtype=jnp.float32)
    key_ = jax.random.normal(kk, (B, S, H), dtype=jnp.float32)
    value = jax.random.normal(kv, (B, S, H), dtype=jnp.float32)

    # Deterministic synthetic projection weights (stand-in for init_weight(nn.Linear))
    wq = jax.random.normal(kwq, (H, A), dtype=jnp.float32) * 0.1
    wk = jax.random.normal(kwk, (H, A), dtype=jnp.float32) * 0.1
    wv = jax.random.normal(kwv, (H, A), dtype=jnp.float32) * 0.1

    out, attn = self_attention(query, key_, value, wq, wk, wv)
    jax.block_until_ready((out, attn))

    ref_out, ref_attn = _reference(query, key_, value, wq, wk, wv)
    assert jnp.allclose(out, ref_out, atol=1e-5, rtol=1e-5)
    assert jnp.allclose(attn, ref_attn, atol=1e-5, rtol=1e-5)

    print("KERNEL_OK")
</pallas_src>

<mosaic_0001>
module attributes {stable_mosaic.version = 11 : i64} {
  func.func @kernel(%arg0: i32, %arg1: memref<1x8x32xf32, #tpu.memory_space<vmem>>, %arg2: memref<1x8x32xf32, #tpu.memory_space<vmem>>, %arg3: memref<1x8x32xf32, #tpu.memory_space<vmem>>, %arg4: memref<32x8xf32, #tpu.memory_space<vmem>>, %arg5: memref<32x8xf32, #tpu.memory_space<vmem>>, %arg6: memref<32x8xf32, #tpu.memory_space<vmem>>, %arg7: memref<1x8x8xf32, #tpu.memory_space<vmem>>, %arg8: memref<1x8x8xf32, #tpu.memory_space<vmem>>) attributes {dimension_semantics = [#tpu.dimension_semantics<parallel>], iteration_bounds = array<i64: 2>, scalar_prefetch = 0 : i64, scratch_operands = 0 : i64, tpu.core_type = #tpu.core_type<tc>, window_params = [{transform_indices = @transform_0, window_bounds = array<i64: 1, 8, 32>}, {transform_indices = @transform_1, window_bounds = array<i64: 1, 8, 32>}, {transform_indices = @transform_2, window_bounds = array<i64: 1, 8, 32>}, {pipeline_mode = #tpu.pipeline_mode<synchronous>, transform_indices = @transform_3, window_bounds = array<i64: 32, 8>}, {pipeline_mode = #tpu.pipeline_mode<synchronous>, transform_indices = @transform_4, window_bounds = array<i64: 32, 8>}, {pipeline_mode = #tpu.pipeline_mode<synchronous>, transform_indices = @transform_5, window_bounds = array<i64: 32, 8>}, {transform_indices = @transform_6, window_bounds = array<i64: 1, 8, 8>}, {transform_indices = @transform_7, window_bounds = array<i64: 1, 8, 8>}]} {
    %c0 = arith.constant 0 : index
    %c0_0 = arith.constant 0 : index
    %c0_1 = arith.constant 0 : index
    %0 = vector.load %arg1[%c0, %c0_0, %c0_1] : memref<1x8x32xf32, #tpu.memory_space<vmem>>, vector<1x8x32xf32>
    %1 = vector.shape_cast %0 : vector<1x8x32xf32> to vector<8x32xf32>
    %c0_2 = arith.constant 0 : index
    %c0_3 = arith.constant 0 : index
    %2 = vector.load %arg4[%c0_2, %c0_3] : memref<32x8xf32, #tpu.memory_space<vmem>>, vector<32x8xf32>
    %cst = arith.constant dense<0.000000e+00> : vector<8x8xf32>
    %3 = tpu.matmul %1, %2, %cst {dimension_numbers = #tpu.dot_dimension_numbers<[1], [0], [0], [1], [0, 0, 1, 1], [], []>} : vector<8x32xf32>, vector<32x8xf32>, vector<8x8xf32> -> vector<8x8xf32>
    %c0_4 = arith.constant 0 : index
    %c0_5 = arith.constant 0 : index
    %c0_6 = arith.constant 0 : index
    %4 = vector.load %arg2[%c0_4, %c0_5, %c0_6] : memref<1x8x32xf32, #tpu.memory_space<vmem>>, vector<1x8x32xf32>
    %5 = vector.shape_cast %4 : vector<1x8x32xf32> to vector<8x32xf32>
    %c0_7 = arith.constant 0 : index
    %c0_8 = arith.constant 0 : index
    %6 = vector.load %arg5[%c0_7, %c0_8] : memref<32x8xf32, #tpu.memory_space<vmem>>, vector<32x8xf32>
    %cst_9 = arith.constant dense<0.000000e+00> : vector<8x8xf32>
    %7 = tpu.matmul %5, %6, %cst_9 {dimension_numbers = #tpu.dot_dimension_numbers<[1], [0], [0], [1], [0, 0, 1, 1], [], []>} : vector<8x32xf32>, vector<32x8xf32>, vector<8x8xf32> -> vector<8x8xf32>
    %c0_10 = arith.constant 0 : index
    %c0_11 = arith.constant 0 : index
    %c0_12 = arith.constant 0 : index
    %8 = vector.load %arg3[%c0_10, %c0_11, %c0_12] : memref<1x8x32xf32, #tpu.memory_space<vmem>>, vector<1x8x32xf32>
    %9 = vector.shape_cast %8 : vector<1x8x32xf32> to vector<8x32xf32>
    %c0_13 = arith.constant 0 : index
    %c0_14 = arith.constant 0 : index
    %10 = vector.load %arg6[%c0_13, %c0_14] : memref<32x8xf32, #tpu.memory_space<vmem>>, vector<32x8xf32>
    %cst_15 = arith.constant dense<0.000000e+00> : vector<8x8xf32>
    %11 = tpu.matmul %9, %10, %cst_15 {dimension_numbers = #tpu.dot_dimension_numbers<[1], [0], [0], [1], [0, 0, 1, 1], [], []>} : vector<8x32xf32>, vector<32x8xf32>, vector<8x8xf32> -> vector<8x8xf32>
    %cst_16 = arith.constant dense<0.000000e+00> : vector<8x8xf32>
    %12 = tpu.matmul %3, %7, %cst_16 {dimension_numbers = #tpu.dot_dimension_numbers<[1], [1], [0], [0], [0, 0, 1, 0], [], []>} : vector<8x8xf32>, vector<8x8xf32>, vector<8x8xf32> -> vector<8x8xf32>
    %cst_17 = arith.constant 0.353553385 : f32
    %13 = vector.broadcast %cst_17 : f32 to vector<8x8xf32>
    %14 = arith.mulf %12, %13 : vector<8x8xf32>
    %cst_18 = arith.constant dense<0xFF800000> : vector<8xf32>
    %15 = vector.multi_reduction <maximumf>, %14, %cst_18 [1] : vector<8x8xf32> to vector<8xf32>
    %16 = vector.shape_cast %15 : vector<8xf32> to vector<8x1xf32>
    %17 = vector.broadcast %16 : vector<8x1xf32> to vector<8x8xf32>
    %18 = arith.subf %14, %17 : vector<8x8xf32>
    %19 = math.exp %18 : vector<8x8xf32>
    %cst_19 = arith.constant dense<0.000000e+00> : vector<8xf32>
    %20 = vector.multi_reduction <add>, %19, %cst_19 [1] : vector<8x8xf32> to vector<8xf32>
    %21 = vector.shape_cast %20 : vector<8xf32> to vector<8x1xf32>
    %22 = tpu.reciprocal %21 : vector<8x1xf32> -> vector<8x1xf32>
    %23 = vector.broadcast %22 : vector<8x1xf32> to vector<8x8xf32>
    %24 = arith.mulf %19, %23 : vector<8x8xf32>
    %c0_20 = arith.constant 0 : index
    %c0_21 = arith.constant 0 : index
    %c0_22 = arith.constant 0 : index
    %25 = vector.load %arg8[%c0_20, %c0_21, %c0_22] : memref<1x8x8xf32, #tpu.memory_space<vmem>>, vector<1x8x8xf32>
    %26 = vector.shape_cast %25 : vector<1x8x8xf32> to vector<8x8xf32>
    %27 = vector.shape_cast %24 : vector<8x8xf32> to vector<1x8x8xf32>
    tpu.vector_store %arg8[%c0_20, %c0_21, %c0_22], %27 {strides = array<i32>} : memref<1x8x8xf32, #tpu.memory_space<vmem>>, vector<1x8x8xf32>,
    %cst_23 = arith.constant dense<0.000000e+00> : vector<8x8xf32>
    %28 = tpu.matmul %24, %11, %cst_23 {dimension_numbers = #tpu.dot_dimension_numbers<[1], [0], [0], [1], [0, 0, 1, 1], [], []>} : vector<8x8xf32>, vector<8x8xf32>, vector<8x8xf32> -> vector<8x8xf32>
    %c0_24 = arith.constant 0 : index
    %c0_25 = arith.constant 0 : index
    %c0_26 = arith.constant 0 : index
    %29 = vector.load %arg7[%c0_24, %c0_25, %c0_26] : memref<1x8x8xf32, #tpu.memory_space<vmem>>, vector<1x8x8xf32>
    %30 = vector.shape_cast %29 : vector<1x8x8xf32> to vector<8x8xf32>
    %31 = vector.shape_cast %28 : vector<8x8xf32> to vector<1x8x8xf32>
    tpu.vector_store %arg7[%c0_24, %c0_25, %c0_26], %31 {strides = array<i32>} : memref<1x8x8xf32, #tpu.memory_space<vmem>>, vector<1x8x8xf32>,
    return
  }
  func.func @transform_0(%arg0: i32) -> (i32, i32, i32) {
    %c0_i32 = arith.constant 0 : i32
    %c0_i32_0 = arith.constant 0 : i32
    %c0_i32_1 = arith.constant 0 : i32
    return %arg0, %c0_i32, %c0_i32_0 : i32, i32, i32
  }
  func.func @transform_1(%arg0: i32) -> (i32, i32, i32) {
    %c0_i32 = arith.constant 0 : i32
    %c0_i32_0 = arith.constant 0 : i32
    %c0_i32_1 = arith.constant 0 : i32
    return %arg0, %c0_i32, %c0_i32_0 : i32, i32, i32
  }
  func.func @transform_2(%arg0: i32) -> (i32, i32, i32) {
    %c0_i32 = arith.constant 0 : i32
    %c0_i32_0 = arith.constant 0 : i32
    %c0_i32_1 = arith.constant 0 : i32
    return %arg0, %c0_i32, %c0_i32_0 : i32, i32, i32
  }
  func.func @transform_3(%arg0: i32) -> (i32, i32) {
    %c0_i32 = arith.constant 0 : i32
    %c0_i32_0 = arith.constant 0 : i32
    %c0_i32_1 = arith.constant 0 : i32
    return %c0_i32, %c0_i32_0 : i32, i32
  }
  func.func @transform_4(%arg0: i32) -> (i32, i32) {
    %c0_i32 = arith.constant 0 : i32
    %c0_i32_0 = arith.constant 0 : i32
    %c0_i32_1 = arith.constant 0 : i32
    return %c0_i32, %c0_i32_0 : i32, i32
  }
  func.func @transform_5(%arg0: i32) -> (i32, i32) {
    %c0_i32 = arith.constant 0 : i32
    %c0_i32_0 = arith.constant 0 : i32
    %c0_i32_1 = arith.constant 0 : i32
    return %c0_i32, %c0_i32_0 : i32, i32
  }
  func.func @transform_6(%arg0: i32) -> (i32, i32, i32) {
    %c0_i32 = arith.constant 0 : i32
    %c0_i32_0 = arith.constant 0 : i32
    %c0_i32_1 = arith.constant 0 : i32
    return %arg0, %c0_i32, %c0_i32_0 : i32, i32, i32
  }
  func.func @transform_7(%arg0: i32) -> (i32, i32, i32) {
    %c0_i32 = arith.constant 0 : i32
    %c0_i32_0 = arith.constant 0 : i32
    %c0_i32_1 = arith.constant 0 : i32
    return %arg0, %c0_i32, %c0_i32_0 : i32, i32, i32
  }
}

</mosaic_0001>

<llo_original>
// kernel: tpu_custom_call.1
$region0: #{tpu_custom_call.1}
  #allocation0 [shape = 'u32[]', space=smem, size = 0x4, offset = 0x4, fixed_abs, tag = 'smem constant byte address 0x4 - core index']
  #allocation1 [shape = 'u32[72,128]{1,0:T(1,128)}', space=vmem, size = 0x9000, scoped, tag = 'internal scratch']
  %s0 = inlined_call_operand.vmem [shape: f32[2,8,32], index: 0, kind: input, shape index: {}]
  %s1 = inlined_call_operand.vmem [shape: f32[2,8,32], index: 1, kind: input, shape index: {}]
  %s2 = inlined_call_operand.vmem [shape: f32[2,8,32], index: 2, kind: input, shape index: {}]
  %s3 = inlined_call_operand.vmem [shape: f32[32,8], index: 3, kind: input, shape index: {}]
  %s4 = inlined_call_operand.vmem [shape: f32[32,8], index: 4, kind: input, shape index: {}]
  %s5 = inlined_call_operand.vmem [shape: f32[32,8], index: 5, kind: input, shape index: {}]
  %s6 = inlined_call_operand.hbm [shape: f32[2,8,8], index: 6, kind: output, shape index: {0}]
  %s7 = inlined_call_operand.hbm [shape: f32[2,8,8], index: 7, kind: output, shape index: {1}]
  %8 = xla_tuple %s6, %s7
  %s9 = sld [smem:[#allocation0]]
  $region65: #{tpu_custom_call.1} parent=0
    _
  %s11 = ssub.s32 1, %s9
  %s12 = scalar_select 0, %s11, %s9
  $region1: #{tpu_custom_call.1} parent=0
    #allocation2 [shape = 'u8[8192]{0}', space=vmem, size = 0x2000, scoped, tag = 'output window, operand 0']
    #allocation3 [shape = 's32[2]{0}', space=sflag, size = 0x8, scoped, tag = 'scoped memory for tpu_custom_call.1']
    #allocation4 [shape = 'u8[8192]{0}', space=vmem, size = 0x2000, scoped, tag = 'output window, operand 1']
    #allocation5 [shape = 's32[2]{0}', space=sflag, size = 0x8, scoped, tag = 'scoped memory for tpu_custom_call.1']
    %13 = vsyncpa [#allocation3], 0
    %s14 = scalar_lea.sflag [#allocation3], 1
    %15 = vsyncpa %s14, 0
    %16 = vsyncpa [#allocation5], 0
    %s17 = scalar_lea.sflag [#allocation5], 1
    %18 = vsyncpa %s17, 0
    loop: start=0, step=1, limit=4
    $region2: #{tpu_custom_call.1} parent=1 // loop_pre_header
      _
    $region3: #{tpu_custom_call.1} parent=1 // loop_header
      %s20 = sphi 0, %s24
      %p21 = scmp.ge.s32.totalorder %s20, 4
      %s30 = sphi 0, %s32
      %s33 = sphi 0, %s30
      %s34 = sphi 0, %s33
      %s50 = sphi 0, %s34
      %s56 = sphi 0, %s58
      %s59 = sphi 0, %s56
      %s60 = sphi 0, %s59
      %s76 = sphi 0, %s60
      %s82 = sphi 0, %s84
      %s85 = sphi 0, %s82
      %s86 = sphi 0, %s85
      %s102 = sphi 0, %s86
      %s106 = sphi 0, %s106
      %s108 = sphi 0, %s106
      %s109 = sphi 0, %s108
      %s123 = sphi 0, %s109
      %s127 = sphi 0, %s127
      %s129 = sphi 0, %s127
      %s130 = sphi 0, %s129
      %s144 = sphi 0, %s130
      %s148 = sphi 0, %s148
      %s150 = sphi 0, %s148
      %s151 = sphi 0, %s150
      %s165 = sphi 0, %s151
      %s171 = sphi 0, %s173
      %s174 = sphi 0, %s171
      %s175 = sphi 0, %s174
      %s191 = sphi 0, %s175
      %s197 = sphi 0, %s199
      %s200 = sphi 0, %s197
      %s201 = sphi 0, %s200
      %s217 = sphi 0, %s201
    $region4: #{tpu_custom_call.1} parent=1 // loop_header_branch
      %23 = sbr.rel (%p21) target = $region8
    $region5: #{tpu_custom_call.1} parent=1 // loop_body
      %s25 = ssub.s32 %s20, 1
      %s26 = ssub.s32 %s20, 2
      %s27 = sadd.s32 %s20, 1
      %s28 = ssub.s32 %s20, %s27
      %p29 = scmp.eq.s32.totalorder %s28, 0
      %s31 = sadd.s32 %s30, 1
      %s32 = scalar_select %p29, %s30, %s31
      %p35 = pneg %p29
      %p36 = scmp.eq.s32.totalorder %s20, 1
      %p37 = por %p35, %p36
      %p38 = scmp.ne.s32.totalorder %s30, %s33
      %p39 = scmp.eq.s32.totalorder %s20, 0
      %p40 = por %p38, %p39
      %p41 = scmp.ne.s32.totalorder %s30, %s33
      %p42 = scmp.eq.s32.totalorder %s25, 1
      %p43 = por %p41, %p42
      %p44 = scmp.ne.s32.totalorder %s33, %s34
      %p45 = scmp.eq.s32.totalorder %s25, 0
      %p46 = por %p44, %p45
      %p47 = scmp.ne.s32.totalorder %s33, %s34
      %p48 = scmp.eq.s32.totalorder %s26, 1
      %p49 = por %p47, %p48
      %p51 = scmp.ne.s32.totalorder %s34, %s50
      %p52 = scmp.eq.s32.totalorder %s26, 0
      %p53 = por %p51, %p52
      %s54 = ssub.s32 %s20, %s27
      %p55 = scmp.eq.s32.totalorder %s54, 0
      %s57 = sadd.s32 %s56, 1
      %s58 = scalar_select %p55, %s56, %s57
      %p61 = pneg %p55
      %p62 = scmp.eq.s32.totalorder %s20, 1
      %p63 = por %p61, %p62
      %p64 = scmp.ne.s32.totalorder %s56, %s59
      %p65 = scmp.eq.s32.totalorder %s20, 0
      %p66 = por %p64, %p65
      %p67 = scmp.ne.s32.totalorder %s56, %s59
      %p68 = scmp.eq.s32.totalorder %s25, 1
      %p69 = por %p67, %p68
      %p70 = scmp.ne.s32.totalorder %s59, %s60
      %p71 = scmp.eq.s32.totalorder %s25, 0
      %p72 = por %p70, %p71
      %p73 = scmp.ne.s32.totalorder %s59, %s60
      %p74 = scmp.eq.s32.totalorder %s26, 1
      %p75 = por %p73, %p74
      %p77 = scmp.ne.s32.totalorder %s60, %s76
      %p78 = scmp.eq.s32.totalorder %s26, 0
      %p79 = por %p77, %p78
      %s80 = ssub.s32 %s20, %s27
      %p81 = scmp.eq.s32.totalorder %s80, 0
      %s83 = sadd.s32 %s82, 1
      %s84 = scalar_select %p81, %s82, %s83
      %p87 = pneg %p81
      %p88 = scmp.eq.s32.totalorder %s20, 1
      %p89 = por %p87, %p88
      %p90 = scmp.ne.s32.totalorder %s82, %s85
      %p91 = scmp.eq.s32.totalorder %s20, 0
      %p92 = por %p90, %p91
      %p93 = scmp.ne.s32.totalorder %s82, %s85
      %p94 = scmp.eq.s32.totalorder %s25, 1
      %p95 = por %p93, %p94
      %p96 = scmp.ne.s32.totalorder %s85, %s86
      %p97 = scmp.eq.s32.totalorder %s25, 0
      %p98 = por %p96, %p97
      %p99 = scmp.ne.s32.totalorder %s85, %s86
      %p100 = scmp.eq.s32.totalorder %s26, 1
      %p101 = por %p99, %p100
      %p103 = scmp.ne.s32.totalorder %s86, %s102
      %p104 = scmp.eq.s32.totalorder %s26, 0
      %p105 = por %p103, %p104
      %s107 = sadd.s32 %s106, 1
      %p110 = scmp.eq.s32.totalorder %s20, 1
      %p111 = scmp.ne.s32.totalorder %s106, %s108
      %p112 = scmp.eq.s32.totalorder %s20, 0
      %p113 = por %p111, %p112
      %p114 = scmp.ne.s32.totalorder %s106, %s108
      %p115 = scmp.eq.s32.totalorder %s25, 1
      %p116 = por %p114, %p115
      %p117 = scmp.ne.s32.totalorder %s108, %s109
      %p118 = scmp.eq.s32.totalorder %s25, 0
      %p119 = por %p117, %p118
      %p120 = scmp.ne.s32.totalorder %s108, %s109
      %p121 = scmp.eq.s32.totalorder %s26, 1
      %p122 = por %p120, %p121
      %p124 = scmp.ne.s32.totalorder %s109, %s123
      %p125 = scmp.eq.s32.totalorder %s26, 0
      %p126 = por %p124, %p125
      %s128 = sadd.s32 %s127, 1
      %p131 = scmp.eq.s32.totalorder %s20, 1
      %p132 = scmp.ne.s32.totalorder %s127, %s129
      %p133 = scmp.eq.s32.totalorder %s20, 0
      %p134 = por %p132, %p133
      %p135 = scmp.ne.s32.totalorder %s127, %s129
      %p136 = scmp.eq.s32.totalorder %s25, 1
      %p137 = por %p135, %p136
      %p138 = scmp.ne.s32.totalorder %s129, %s130
      %p139 = scmp.eq.s32.totalorder %s25, 0
      %p140 = por %p138, %p139
      %p141 = scmp.ne.s32.totalorder %s129, %s130
      %p142 = scmp.eq.s32.totalorder %s26, 1
      %p143 = por %p141, %p142
      %p145 = scmp.ne.s32.totalorder %s130, %s144
      %p146 = scmp.eq.s32.totalorder %s26, 0
      %p147 = por %p145, %p146
      %s149 = sadd.s32 %s148, 1
      %p152 = scmp.eq.s32.totalorder %s20, 1
      %p153 = scmp.ne.s32.totalorder %s148, %s150
      %p154 = scmp.eq.s32.totalorder %s20, 0
      %p155 = por %p153, %p154
      %p156 = scmp.ne.s32.totalorder %s148, %s150
      %p157 = scmp.eq.s32.totalorder %s25, 1
      %p158 = por %p156, %p157
      %p159 = scmp.ne.s32.totalorder %s150, %s151
      %p160 = scmp.eq.s32.totalorder %s25, 0
      %p161 = por %p159, %p160
      %p162 = scmp.ne.s32.totalorder %s150, %s151
      %p163 = scmp.eq.s32.totalorder %s26, 1
      %p164 = por %p162, %p163
      %p166 = scmp.ne.s32.totalorder %s151, %s165
      %p167 = scmp.eq.s32.totalorder %s26, 0
      %p168 = por %p166, %p167
      %s169 = ssub.s32 %s20, %s27
      %p170 = scmp.eq.s32.totalorder %s169, 0
      %s172 = sadd.s32 %s171, 1
      %s173 = scalar_select %p170, %s171, %s172
      %p176 = pneg %p170
      %p177 = scmp.eq.s32.totalorder %s20, 1
      %p178 = por %p176, %p177
      %p179 = scmp.ne.s32.totalorder %s171, %s174
      %p180 = scmp.eq.s32.totalorder %s20, 0
      %p181 = por %p179, %p180
      %p182 = scmp.ne.s32.totalorder %s171, %s174
      %p183 = scmp.eq.s32.totalorder %s25, 1
      %p184 = por %p182, %p183
      %p185 = scmp.ne.s32.totalorder %s174, %s175
      %p186 = scmp.eq.s32.totalorder %s25, 0
      %p187 = por %p185, %p186
      %p188 = scmp.ne.s32.totalorder %s174, %s175
      %p189 = scmp.eq.s32.totalorder %s26, 1
      %p190 = por %p188, %p189
      %p192 = scmp.ne.s32.totalorder %s175, %s191
      %p193 = scmp.eq.s32.totalorder %s26, 0
      %p194 = por %p192, %p193
      %s195 = ssub.s32 %s20, %s27
      %p196 = scmp.eq.s32.totalorder %s195, 0
      %s198 = sadd.s32 %s197, 1
      %s199 = scalar_select %p196, %s197, %s198
      %p202 = pneg %p196
      %p203 = scmp.eq.s32.totalorder %s20, 1
      %p204 = por %p202, %p203
      %p205 = scmp.ne.s32.totalorder %s197, %s200
      %p206 = scmp.eq.s32.totalorder %s20, 0
      %p207 = por %p205, %p206
      %p208 = scmp.ne.s32.totalorder %s197, %s200
      %p209 = scmp.eq.s32.totalorder %s25, 1
      %p210 = por %p208, %p209
      %p211 = scmp.ne.s32.totalorder %s200, %s201
      %p212 = scmp.eq.s32.totalorder %s25, 0
      %p213 = por %p211, %p212
      %p214 = scmp.ne.s32.totalorder %s200, %s201
      %p215 = scmp.eq.s32.totalorder %s26, 1
      %p216 = por %p214, %p215
      %p218 = scmp.ne.s32.totalorder %s201, %s217
      %p219 = scmp.eq.s32.totalorder %s26, 0
      %p220 = por %p218, %p219
      %p221 = scmp.le.s32.totalorder 1, %s20
      %p222 = scmp.lt.s32.totalorder %s20, 3
      %p223 = pnand %p221, %p222
      %p224 = pneg %p223
      // Predicated region
      $region9: #{tpu_custom_call.1} parent=5 // pred_check
        _
      $region10: #{tpu_custom_call.1} parent=5 // pred_check_branch
        %226 = sbr.rel (%p223) target = $region12
      $region11: #{tpu_custom_call.1} parent=5 // pred_region
        %s227 = ssub.s32 %s20, 1
        // Predicated region
        $region13: #{tpu_custom_call.1} parent=11 // pred_check
          %p228 = pneg %p119
        $region14: #{tpu_custom_call.1} parent=11 // pred_check_branch
          %230 = sbr.rel (%p228) target = $region16
        $region15: #{tpu_custom_call.1} parent=11 // pred_region
          _
        $region16: #{tpu_custom_call.1} parent=11 // pred_fallthru
          _
        // Predicated region
        $region17: #{tpu_custom_call.1} parent=11 // pred_check
          %p231 = pneg %p140
        $region18: #{tpu_custom_call.1} parent=11 // pred_check_branch
          %233 = sbr.rel (%p231) target = $region20
        $region19: #{tpu_custom_call.1} parent=11 // pred_region
          _
        $region20: #{tpu_custom_call.1} parent=11 // pred_fallthru
          _
        // Predicated region
        $region21: #{tpu_custom_call.1} parent=11 // pred_check
          %p234 = pneg %p161
        $region22: #{tpu_custom_call.1} parent=11 // pred_check_branch
          %236 = sbr.rel (%p234) target = $region24
        $region23: #{tpu_custom_call.1} parent=11 // pred_region
          _
        $region24: #{tpu_custom_call.1} parent=11 // pred_fallthru
          _
      $region12: #{tpu_custom_call.1} parent=5 // pred_fallthru
        _
      %p237 = scmp.lt.s32.totalorder %s20, 2
      // Predicated region
      $region25: #{tpu_custom_call.1} parent=5 // pred_check
        %p238 = pneg %p237
      $region26: #{tpu_custom_call.1} parent=5 // pred_check_branch
        %240 = sbr.rel (%p238) target = $region28
      $region27: #{tpu_custom_call.1} parent=5 // pred_region
        // Predicated region
        $region29: #{tpu_custom_call.1} parent=27 // pred_check
          %p241 = pneg %p40
        $region30: #{tpu_custom_call.1} parent=27 // pred_check_branch
          %243 = sbr.rel (%p241) target = $region32
        $region31: #{tpu_custom_call.1} parent=27 // pred_region
          %p244 = scmp.lt.s32.totalorder %s20, 1
          %s245 = scalar_select %p244, %s20, 1
          %s246 = smul.addr %s245, 8
          %s247 = scalar_lea.vmem %s0, %s246
        $region32: #{tpu_custom_call.1} parent=27 // pred_fallthru
          _
        // Predicated region
        $region33: #{tpu_custom_call.1} parent=27 // pred_check
          %p248 = pneg %p66
        $region34: #{tpu_custom_call.1} parent=27 // pred_check_branch
          %250 = sbr.rel (%p248) target = $region36
        $region35: #{tpu_custom_call.1} parent=27 // pred_region
          %p251 = scmp.lt.s32.totalorder %s20, 1
          %s252 = scalar_select %p251, %s20, 1
          %s253 = smul.addr %s252, 8
          %s254 = scalar_lea.vmem %s1, %s253
        $region36: #{tpu_custom_call.1} parent=27 // pred_fallthru
          _
        // Predicated region
        $region37: #{tpu_custom_call.1} parent=27 // pred_check
          %p255 = pneg %p92
        $region38: #{tpu_custom_call.1} parent=27 // pred_check_branch
          %257 = sbr.rel (%p255) target = $region40
        $region39: #{tpu_custom_call.1} parent=27 // pred_region
          %p258 = scmp.lt.s32.totalorder %s20, 1
          %s259 = scalar_select %p258, %s20, 1
          %s260 = smul.addr %s259, 8
          %s261 = scalar_lea.vmem %s2, %s260
        $region40: #{tpu_custom_call.1} parent=27 // pred_fallthru
          _
      $region28: #{tpu_custom_call.1} parent=5 // pred_fallthru
        _
      %p262 = scmp.le.s32.totalorder 1, %s20
      %p263 = scmp.lt.s32.totalorder %s20, 3
      %p264 = pnand %p262, %p263
      %p265 = pneg %p264
      // Predicated region
      $region41: #{tpu_custom_call.1} parent=5 // pred_check
        _
      $region42: #{tpu_custom_call.1} parent=5 // pred_check_branch
        %267 = sbr.rel (%p264) target = $region44
      $region43: #{tpu_custom_call.1} parent=5 // pred_region
        %s268 = ssub.s32 %s20, 1
        %p269 = scmp.lt.s32.totalorder %s25, 1
        %s270 = scalar_select %p269, %s25, 1
        %s271 = smul.addr %s270, 8
        %s272 = scalar_lea.vmem %s0, %s271
        %p273 = pneg %p46
        %p274 = pneg %p43
        %p275 = scmp.lt.s32.totalorder %s25, 1
        %s276 = scalar_select %p275, %s25, 1
        %s277 = smul.addr %s276, 8
        %s278 = scalar_lea.vmem %s1, %s277
        %p279 = pneg %p72
        %p280 = pneg %p69
        %p281 = scmp.lt.s32.totalorder %s25, 1
        %s282 = scalar_select %p281, %s25, 1
        %s283 = smul.addr %s282, 8
        %s284 = scalar_lea.vmem %s2, %s283
        %p285 = pneg %p98
        %p286 = pneg %p95
        %p287 = pneg %p119
        %p288 = pneg %p116
        %p289 = pneg %p140
        %p290 = pneg %p137
        %p291 = pneg %p161
        %p292 = pneg %p158
        %p293 = pneg %p187
        %p294 = pneg %p184
        %s295 = sand.u32 %s174, 1
        %s296 = scalar_lea.sflag [#allocation3], %s295
        %s297 = sand.u32 %s174, 1
        %s298 = smul.addr %s297, 8
        %s299 = scalar_lea.vmem [#allocation2], %s298
        %p300 = pneg %p213
        %p301 = pneg %p210
        %s302 = sand.u32 %s200, 1
        %s303 = scalar_lea.sflag [#allocation5], %s302
        %s304 = sand.u32 %s200, 1
        %s305 = smul.addr %s304, 8
        %s306 = scalar_lea.vmem [#allocation4], %s305
        %p307 = scmp.lt.s32.totalorder %s25, 1
        %s308 = scalar_select %p307, %s25, 1
        %s309 = smul.addr %s308, 8
        %s310 = scalar_lea.vmem %s0, %s309
        %p311 = scmp.lt.s32.totalorder %s25, 1
        %s312 = scalar_select %p311, %s25, 1
        %s313 = smul.addr %s312, 8
        %s314 = scalar_lea.vmem %s1, %s313
        %p315 = scmp.lt.s32.totalorder %s25, 1
        %s316 = scalar_select %p315, %s25, 1
        %s317 = smul.addr %s316, 8
        %s318 = scalar_lea.vmem %s2, %s317
        %v319 = vld [vmem:[%s310] sm:$0xff]
        %v320 = vld [vmem:[%s3] sm:$0xff]
        %v321 = vld [vmem:[%s3 + $0x8] sm:$0xff]
        %v322 = vld [vmem:[%s3 + $0x10] sm:$0xff]
        %v323 = vld [vmem:[%s3 + $0x18] sm:$0xff]
        %vm324 = vcmask 261120
        %v326 = vsel %vm324, %v319, 0
        %328 = vmatpush.msra.mxu0 0.0
        %329 = vmatpush.msra.mxu0 0.0
        %330 = vmatpush.msra.mxu0 0.0
        %331 = vmatpush.msra.mxu0 0.0
        %332 = vmatpush.msra.mxu0 0.0
        %333 = vmatpush.msra.mxu0 0.0
        %334 = vmatpush.msra.mxu0 0.0
        %335 = vmatpush.msra.mxu0 0.0
        %336 = vmatpush.msra.mxu0 0.0
        %337 = vmatpush.msra.mxu0 0.0
        %338 = vmatpush.msra.mxu0 0.0
        %339 = vmatpush.msra.mxu0 0.0
        %340 = vmatpush.msra.mxu0 %v323
        %341 = vmatpush.msra.mxu0 %v322
        %342 = vmatpush.msra.mxu0 %v321
        %343 = vmatpush.msra.mxu0 %v320
        %344 = vmatmul.f32.gmra.mxu0 %v326
        %v345 = vpop.f32.mrf.mxu0
        %v346 = vadd.f32 0.0, %v345
        %347 = vdwg.mxu0
        %v348 = vld [vmem:[%s314] sm:$0xff]
        %v349 = vld [vmem:[%s4] sm:$0xff]
        %v350 = vld [vmem:[%s4 + $0x8] sm:$0xff]
        %v351 = vld [vmem:[%s4 + $0x10] sm:$0xff]
        %v352 = vld [vmem:[%s4 + $0x18] sm:$0xff]
        %v354 = vsel %vm324, %v348, 0
        %356 = vmatpush.msra.mxu0 0.0
        %357 = vmatpush.msra.mxu0 0.0
        %358 = vmatpush.msra.mxu0 0.0
        %359 = vmatpush.msra.mxu0 0.0
        %360 = vmatpush.msra.mxu0 0.0
        %361 = vmatpush.msra.mxu0 0.0
        %362 = vmatpush.msra.mxu0 0.0
        %363 = vmatpush.msra.mxu0 0.0
        %364 = vmatpush.msra.mxu0 0.0
        %365 = vmatpush.msra.mxu0 0.0
        %366 = vmatpush.msra.mxu0 0.0
        %367 = vmatpush.msra.mxu0 0.0
        %368 = vmatpush.msra.mxu0 %v352
        %369 = vmatpush.msra.mxu0 %v351
        %370 = vmatpush.msra.mxu0 %v350
        %371 = vmatpush.msra.mxu0 %v349
        %372 = vmatmul.f32.gmra.mxu0 %v354
        %v373 = vpop.f32.mrf.mxu0
        %v374 = vadd.f32 0.0, %v373
        %375 = vdwg.mxu0
        %v376 = vld [vmem:[%s318] sm:$0xff]
        %v377 = vld [vmem:[%s5] sm:$0xff]
        %v378 = vld [vmem:[%s5 + $0x8] sm:$0xff]
        %v379 = vld [vmem:[%s5 + $0x10] sm:$0xff]
        %v380 = vld [vmem:[%s5 + $0x18] sm:$0xff]
        %v382 = vsel %vm324, %v376, 0
        %384 = vmatpush.msra.mxu0 0.0
        %385 = vmatpush.msra.mxu0 0.0
        %386 = vmatpush.msra.mxu0 0.0
        %387 = vmatpush.msra.mxu0 0.0
        %388 = vmatpush.msra.mxu0 0.0
        %389 = vmatpush.msra.mxu0 0.0
        %390 = vmatpush.msra.mxu0 0.0
        %391 = vmatpush.msra.mxu0 0.0
        %392 = vmatpush.msra.mxu0 0.0
        %393 = vmatpush.msra.mxu0 0.0
        %394 = vmatpush.msra.mxu0 0.0
        %395 = vmatpush.msra.mxu0 0.0
        %396 = vmatpush.msra.mxu0 %v380
        %397 = vmatpush.msra.mxu0 %v379
        %398 = vmatpush.msra.mxu0 %v378
        %399 = vmatpush.msra.mxu0 %v377
        %400 = vmatmul.f32.gmra.mxu0 %v382
        %v401 = vpop.f32.mrf.mxu0
        %v402 = vadd.f32 0.0, %v401
        %403 = vdwg.mxu0
        %vm404 = vcmask 64512
        %v406 = vsel %vm404, %v346, 0
        %v409 = vsel %vm404, %v374, 0
        %411 = vmatpush.xpose.msra.mxu0 0.0
        %412 = vmatpush.xpose.msra.mxu0 0.0
        %413 = vmatpush.xpose.msra.mxu0 0.0
        %414 = vmatpush.xpose.msra.mxu0 0.0
        %415 = vmatpush.xpose.msra.mxu0 0.0
        %416 = vmatpush.xpose.msra.mxu0 0.0
        %417 = vmatpush.xpose.msra.mxu0 0.0
        %418 = vmatpush.xpose.msra.mxu0 0.0
        %419 = vmatpush.xpose.msra.mxu0 0.0
        %420 = vmatpush.xpose.msra.mxu0 0.0
        %421 = vmatpush.xpose.msra.mxu0 0.0
        %422 = vmatpush.xpose.msra.mxu0 0.0
        %423 = vmatpush.xpose.msra.mxu0 0.0
        %424 = vmatpush.xpose.msra.mxu0 0.0
        %425 = vmatpush.xpose.msra.mxu0 0.0
        %426 = vmatpush.xpose.msra.mxu0 %v409
        %427 = vmatmul.f32.gmra.mxu0 %v406
        %v428 = vpop.f32.mrf.mxu0
        %v429 = vadd.f32 0.0, %v428
        %430 = vdwg.mxu0
        %v431 = vmul.f32 %v429, 0.35355338
        %v432 = vsel %vm404, %v431, -inf
        %433 = vmax.xlane.f32.xlu0 %v432
        %v434 = vpop.xlane.xlu0 %433
        %v435 = vsub.f32 %v431, %v434
        %v436 = vmul.f32 %v435, 1.442695
        %v437 = vpow.pop %v436
        %v438 = vsel %vm404, %v437, 0.0
        %439 = vadd.xlane.f32.xlu0 %v438
        %v440 = vpop.xlane.xlu0 %439
        %v441 = vrcp.pop %v440
        %v442 = vmul.f32 %v440, %v441
        %v443 = vsub.f32 1.0, %v442
        %v444 = vmul.f32 %v441, %v443
        %v445 = vadd.f32 %v441, %v444
        %vm446 = vweird.f32 %v440
        %vm447 = vweird.f32 %v441
        %vm448 = vmor %vm446, %vm447
        %v449 = vsel %vm448, %v441, %v445
        %v450 = vand.u32 2147483647, %v440
        %vm451 = vcmp.eq.f32.partialorder %v450, 8.507059e+37
        %v452 = vand.u32 %v440, 2147483648
        %v453 = vor.u32 1.1754944e-38, %v452
        %v454 = vsel %vm451, %v453, %v449
        %v455 = vmul.f32 %v437, %v454
        %456 = vst.msk [vmem:[%s306] sm:$0xff] %vm404, %v455
        %v458 = vsel %vm404, %v455, 0
        %460 = vmatpush.msra.mxu0 0.0
        %461 = vmatpush.msra.mxu0 0.0
        %462 = vmatpush.msra.mxu0 0.0
        %463 = vmatpush.msra.mxu0 0.0
        %464 = vmatpush.msra.mxu0 0.0
        %465 = vmatpush.msra.mxu0 0.0
        %466 = vmatpush.msra.mxu0 0.0
        %467 = vmatpush.msra.mxu0 0.0
        %468 = vmatpush.msra.mxu0 0.0
        %469 = vmatpush.msra.mxu0 0.0
        %470 = vmatpush.msra.mxu0 0.0
        %471 = vmatpush.msra.mxu0 0.0
        %472 = vmatpush.msra.mxu0 0.0
        %473 = vmatpush.msra.mxu0 0.0
        %474 = vmatpush.msra.mxu0 0.0
        %475 = vmatpush.msra.mxu0 %v402
        %476 = vmatmul.f32.gmra.mxu0 %v458
        %v477 = vpop.f32.mrf.mxu0
        %v478 = vadd.f32 0.0, %v477
        %479 = vdwg.mxu0
        %480 = vst.msk [vmem:[%s299] sm:$0xff] %vm404, %v478
        %s481 = sand.u32 %s174, 1
        %s482 = scalar_lea.sflag [#allocation3], %s481
        %s483 = sand.u32 %s174, 1
        %s484 = smul.addr %s483, 8
        %s485 = scalar_lea.vmem [#allocation2], %s484
        %s486 = sand.u32 %s200, 1
        %s487 = scalar_lea.sflag [#allocation5], %s486
        %s488 = sand.u32 %s200, 1
        %s489 = smul.addr %s488, 8
        %s490 = scalar_lea.vmem [#allocation4], %s489
        // Predicated region
        $region45: #{tpu_custom_call.1} parent=43 // pred_check
          %p491 = pneg %p184
        $region46: #{tpu_custom_call.1} parent=43 // pred_check_branch
          %493 = sbr.rel (%p491) target = $region48
        $region47: #{tpu_custom_call.1} parent=43 // pred_region
          %495 = vsyncadd %s482, 0
          %s496 = smul.addr %s25, 8
          %s497 = scalar_lea.hbm %s6, %s496
          %s499 = sshll.u32 %s485, 4
          %s500 = int_to_ptr.vmem [resolvable:$true] %s499
          %s501 = sshll.u32 %s497, 4
          %s502 = int_to_ptr.hbm [resolvable:$true] %s501
          %504 = dma.vmem_to_hbm [thread:$0]  %s500, 128, %s502, %s482
        $region48: #{tpu_custom_call.1} parent=43 // pred_fallthru
          _
        // Predicated region
        $region49: #{tpu_custom_call.1} parent=43 // pred_check
          %p505 = pneg %p210
        $region50: #{tpu_custom_call.1} parent=43 // pred_check_branch
          %507 = sbr.rel (%p505) target = $region52
        $region51: #{tpu_custom_call.1} parent=43 // pred_region
          %509 = vsyncadd %s487, 0
          %s510 = smul.addr %s25, 8
          %s511 = scalar_lea.hbm %s7, %s510
          %s513 = sshll.u32 %s490, 4
          %s514 = int_to_ptr.vmem [resolvable:$true] %s513
          %s515 = sshll.u32 %s511, 4
          %s516 = int_to_ptr.hbm [resolvable:$true] %s515
          %518 = dma.vmem_to_hbm [thread:$0]  %s514, 128, %s516, %s487
        $region52: #{tpu_custom_call.1} parent=43 // pred_fallthru
          _
      $region44: #{tpu_custom_call.1} parent=5 // pred_fallthru
        _
      %p519 = scmp.le.s32.totalorder 2, %s20
      // Predicated region
      $region53: #{tpu_custom_call.1} parent=5 // pred_check
        %p520 = pneg %p519
      $region54: #{tpu_custom_call.1} parent=5 // pred_check_branch
        %522 = sbr.rel (%p520) target = $region56
      $region55: #{tpu_custom_call.1} parent=5 // pred_region
        %s523 = ssub.s32 %s20, 2
        // Predicated region
        $region57: #{tpu_custom_call.1} parent=55 // pred_check
          %p524 = pneg %p190
        $region58: #{tpu_custom_call.1} parent=55 // pred_check_branch
          %526 = sbr.rel (%p524) target = $region60
        $region59: #{tpu_custom_call.1} parent=55 // pred_region
          %s527 = sand.u32 %s175, 1
          %s528 = scalar_lea.sflag [#allocation3], %s527
          %s529 = sand.u32 %s175, 1
          %s530 = smul.addr %s529, 8
          %s531 = scalar_lea.vmem [#allocation2], %s530
          %533 = dma.done %s528, 128
        $region60: #{tpu_custom_call.1} parent=55 // pred_fallthru
          _
        // Predicated region
        $region61: #{tpu_custom_call.1} parent=55 // pred_check
          %p534 = pneg %p216
        $region62: #{tpu_custom_call.1} parent=55 // pred_check_branch
          %536 = sbr.rel (%p534) target = $region64
        $region63: #{tpu_custom_call.1} parent=55 // pred_region
          %s537 = sand.u32 %s201, 1
          %s538 = scalar_lea.sflag [#allocation5], %s537
          %s539 = sand.u32 %s201, 1
          %s540 = smul.addr %s539, 8
          %s541 = scalar_lea.vmem [#allocation4], %s540
          %543 = dma.done %s538, 128
        $region64: #{tpu_custom_call.1} parent=55 // pred_fallthru
          _
      $region56: #{tpu_custom_call.1} parent=5 // pred_fallthru
        _
    $region6: #{tpu_custom_call.1} parent=1 // loop_footer
      %s24 = sadd.s32 1, %s20
    $region7: #{tpu_custom_call.1} parent=1 // loop_footer_branch
      %19 = sbr.rel target = $region3
    $region8: #{tpu_custom_call.1} parent=1 // loop_exit
      _
    %544 = vsyncpa [#allocation3], 1
    %s545 = scalar_lea.sflag [#allocation3], 1
    %546 = vsyncpa %s545, 1
    %547 = vsyncpa [#allocation5], 1
    %s548 = scalar_lea.sflag [#allocation5], 1
    %549 = vsyncpa %s548, 1

</llo_original>
